<compile_context>
chip_gen: v7x
topology: tpu7x:2x2x1
jax: 0.10.0
libtpu: 0.0.40
codegen_flags: <defaults>
</compile_context>

<pallas_src>
import functools

import jax
import jax.numpy as jnp
from jax.experimental import pallas as pl
from jax.experimental.pallas import tpu as pltpu

_LANE = 128   # lane width (last-dim tiling)
_SUB = 8      # f32 sublane width (second-to-last-dim tiling)


def _round_up(x: int, m: int) -> int:
    return (x + m - 1) // m * m


def _vmem_capacity_bytes() -> int:
    try:
        return int(pltpu.get_tpu_info().vmem_capacity_bytes)
    except Exception:
        return 64 << 20  # conservative: v7x physical VMEM per TensorCore


def _pick_tn(n_out_p: int, cap_lanes: int) -> int:
    """Largest multiple of 128 that divides n_out_p and is <= cap_lanes."""
    k = n_out_p // _LANE
    best = _LANE
    for d in range(1, k + 1):
        if k % d == 0 and _LANE * d <= cap_lanes:
            best = _LANE * d
    return best


# --------------------------------------------------------------------------
# Kernels
# --------------------------------------------------------------------------
def _decoder_kernel_resident(z_ref, w1_ref, b1_ref, w2_ref, b2_ref, out_ref,
                             *, mxu_dtype):
    """1-D grid over batch; W1/b1/W2/b2 fully VMEM-resident (constant index_map).
    Weights already arrive in mxu_dtype (pre-cast in the wrapper)."""
    h = jnp.dot(z_ref[...].astype(mxu_dtype), w1_ref[...],
                preferred_element_type=jnp.float32)
    h = jnp.maximum(h + b1_ref[...].astype(jnp.float32), 0.0)   # (TB, n_f_p) f32
    o = jnp.dot(h.astype(mxu_dtype), w2_ref[...],
                preferred_element_type=jnp.float32)
    out_ref[...] = (o + b2_ref[...].astype(jnp.float32)).astype(out_ref.dtype)


def _decoder_kernel_tiled(z_ref, w1_ref, b1_ref, w2_ref, b2_ref, out_ref,
                          h_ref, *, mxu_dtype):
    """2-D grid (batch x n_out tiles). Hidden activation computed once per batch
    tile (j == 0) into a VMEM scratch and reused for every W2 column block."""
    @pl.when(pl.program_id(1) == 0)
    def _():
        h = jnp.dot(z_ref[...].astype(mxu_dtype), w1_ref[...],
                    preferred_element_type=jnp.float32)
        h = jnp.maximum(h + b1_ref[...].astype(jnp.float32), 0.0)
        h_ref[...] = h.astype(h_ref.dtype)

    o = jnp.dot(h_ref[...], w2_ref[...], preferred_element_type=jnp.float32)
    out_ref[...] = (o + b2_ref[...].astype(jnp.float32)).astype(out_ref.dtype)


# --------------------------------------------------------------------------
# Wrapper
# --------------------------------------------------------------------------
def prepare_decoder_params(w1, b1, w2, b2, mxu_dtype):
    """Pad feature dims to lane multiples and pre-cast weights to the MXU
    operand dtype ONCE (cache the result on the inference hot path)."""
    n_z, n_f = w1.shape
    n_out = w2.shape[1]
    n_f_p = _round_up(n_f, _LANE)
    n_out_p = _round_up(n_out, _LANE)
    w1_p = jnp.pad(w1, ((0, 0), (0, n_f_p - n_f))).astype(mxu_dtype)
    b1_p = jnp.pad(jnp.reshape(b1, (1, -1)), ((0, 0), (0, n_f_p - n_f)))
    w2_p = jnp.pad(w2, ((0, n_f_p - n_f), (0, n_out_p - n_out))).astype(mxu_dtype)
    b2_p = jnp.pad(jnp.reshape(b2, (1, -1)), ((0, 0), (0, n_out_p - n_out)))
    return dict(w1=w1_p, b1=b1_p, w2=w2_p, b2=b2_p,
                n_z=n_z, n_f=n_f, n_out=n_out, n_f_p=n_f_p, n_out_p=n_out_p,
                mxu_dtype=mxu_dtype)


def decoder_apply(z, params, *, tb=None, tn=None, force_weight_tiling=False):
    B, n_z = z.shape
    assert n_z == params["n_z"], "z feature dim mismatch"
    n_out, n_f_p, n_out_p = params["n_out"], params["n_f_p"], params["n_out_p"]
    mxu_dtype = params["mxu_dtype"]
    w1_p, b1_p, w2_p, b2_p = params["w1"], params["b1"], params["w2"], params["b2"]

    z_itm = jnp.dtype(z.dtype).itemsize
    out_itm = z_itm
    w_itm = jnp.dtype(mxu_dtype).itemsize
    b_itm = jnp.dtype(b1_p.dtype).itemsize
    mxu_itm = w_itm

    # --- generation-aware VMEM budget (leave headroom for compiler scratch) --
    vmem_cap = _vmem_capacity_bytes()
    budget = max(vmem_cap - (12 << 20), 16 << 20)

    # Resident-weight plan bookkeeping (factor 2 = pipeline double-buffering).
    w_resident = 2 * ((n_z * n_f_p + n_f_p * n_out_p) * w_itm
                      + (n_f_p + n_out_p) * b_itm)
    per_row = (2 * n_z * z_itm + 2 * n_out_p * out_itm        # z / out tiles
               + n_f_p * (4 + mxu_itm)                        # h f32 + h cast
               + n_out_p * 4)                                 # o f32 temp
    use_tiled = force_weight_tiling or (w_resident + _SUB * per_row > budget)

    flops = 2 * (n_z * n_f_p + n_f_p * n_out_p)  # per padded batch row

    if not use_tiled:
        # ---------------- 1-D grid, weights VMEM-resident --------------------
        if tb is None:
            tb = min((((budget - w_resident) // per_row) // _SUB) * _SUB, 2048)
            if B > _SUB:   # keep >= 2 grid steps so megacore can split the batch
                tb = min(tb, _round_up((B + 1) // 2, _SUB))
        tb = max(_SUB, min(_round_up(tb, _SUB), _round_up(B, _SUB)))
        B_p = _round_up(B, tb)
        z_p = z if B_p == B else jnp.pad(z, ((0, B_p - B), (0, 0)))

        est = w_resident + tb * per_row
        cp = dict(dimension_semantics=("parallel",))
        if est > (16 << 20):
            cp["vmem_limit_bytes"] = int(min(est + (4 << 20), vmem_cap - (4 << 20)))

        bytes_accessed = (B_p * (n_z * z_itm + n_out_p * out_itm)
                          + (n_z * n_f_p + n_f_p * n_out_p) * w_itm
                          + (n_f_p + n_out_p) * b_itm)

        out_p = pl.pallas_call(
            functools.partial(_decoder_kernel_resident, mxu_dtype=mxu_dtype),
            out_shape=jax.ShapeDtypeStruct((B_p, n_out_p), z.dtype),
            grid=(B_p // tb,),
            in_specs=[
                pl.BlockSpec((tb, n_z), lambda i: (i, 0)),         # z: batch-tiled
                pl.BlockSpec((n_z, n_f_p), lambda i: (0, 0)),      # W1 resident
                pl.BlockSpec((1, n_f_p), lambda i: (0, 0)),        # b1 resident
                pl.BlockSpec((n_f_p, n_out_p), lambda i: (0, 0)),  # W2 resident
                pl.BlockSpec((1, n_out_p), lambda i: (0, 0)),      # b2 resident
            ],
            out_specs=pl.BlockSpec((tb, n_out_p), lambda i: (i, 0)),
            compiler_params=pltpu.CompilerParams(**cp),
            cost_estimate=pl.CostEstimate(flops=int(flops * B_p),
                                          transcendentals=0,
                                          bytes_accessed=int(bytes_accessed)),
        )(z_p, w1_p, b1_p, w2_p, b2_p)
    else:
        # -------- 2-D grid fallback: W2/b2 streamed over n_out tiles ---------
        if tb is None:
            tb = 256
            if B > _SUB:
                tb = min(tb, _round_up((B + 1) // 2, _SUB))
        tb = max(_SUB, min(_round_up(tb, _SUB), _round_up(B, _SUB)))
        B_p = _round_up(B, tb)
        z_p = z if B_p == B else jnp.pad(z, ((0, B_p - B), (0, 0)))

        fixed = (2 * n_z * n_f_p * w_itm + 2 * n_f_p * b_itm    # W1/b1 resident
                 + 2 * tb * n_z * z_itm                         # z tile
                 + tb * n_f_p * (mxu_itm + 4))                  # h scratch + f32 temp
        per_lane = 2 * n_f_p * w_itm + 2 * b_itm + 2 * tb * out_itm + tb * 4
        cap_lanes = (max((budget - fixed) // per_lane, _LANE)
                     if tn is None else int(tn))
        tn = _pick_tn(n_out_p, cap_lanes)

        est = fixed + tn * per_lane
        cp = dict(dimension_semantics=("parallel", "arbitrary"))
        if est > (16 << 20):
            cp["vmem_limit_bytes"] = int(min(est + (4 << 20), vmem_cap - (4 << 20)))

        bytes_accessed = (B_p * (n_z * z_itm + n_out_p * out_itm)
                          + (B_p // tb) * n_f_p * n_out_p * w_itm  # W2 re-streamed
                          + n_z * n_f_p * w_itm + (n_f_p + n_out_p) * b_itm)

        out_p = pl.pallas_call(
            functools.partial(_decoder_kernel_tiled, mxu_dtype=mxu_dtype),
            out_shape=jax.ShapeDtypeStruct((B_p, n_out_p), z.dtype),
            grid=(B_p // tb, n_out_p // tn),
            in_specs=[
                pl.BlockSpec((tb, n_z), lambda i, j: (i, 0)),
                pl.BlockSpec((n_z, n_f_p), lambda i, j: (0, 0)),
                pl.BlockSpec((1, n_f_p), lambda i, j: (0, 0)),
                pl.BlockSpec((n_f_p, tn), lambda i, j: (0, j)),
                pl.BlockSpec((1, tn), lambda i, j: (0, j)),
            ],
            out_specs=pl.BlockSpec((tb, tn), lambda i, j: (i, j)),
            scratch_shapes=[pltpu.VMEM((tb, n_f_p), mxu_dtype)],
            compiler_params=pltpu.CompilerParams(**cp),
            cost_estimate=pl.CostEstimate(flops=int(flops * B_p),
                                          transcendentals=0,
                                          bytes_accessed=int(bytes_accessed)),
        )(z_p, w1_p, b1_p, w2_p, b2_p)

    if B_p != B or n_out_p != n_out:
        # NOTE: this slice is an HBM copy when n_out isn't lane-aligned; callers
        # that can consume the padded (B_p, n_out_p) layout should skip it.
        out_p = out_p[:B, :n_out]
    return out_p


def decoder_forward(z, w1, b1, w2, b2, *, mxu_dtype=None, tb=None, tn=None,
                    force_weight_tiling=False):
    """z: (B, n_z); w1: (n_z, n_f); b1: (n_f,)|(1,n_f); w2: (n_f, n_out);
    b2: (n_out,)|(1,n_out). Returns (B, n_out) in z.dtype."""
    if mxu_dtype is None:
        # bf16 MXU operands (f32 accumulation) by default for f32 inputs.
        mxu_dtype = jnp.bfloat16 if z.dtype == jnp.float32 else z.dtype
    params = prepare_decoder_params(w1, b1, w2, b2, mxu_dtype)
    return decoder_apply(z, params, tb=tb, tn=tn,
                         force_weight_tiling=force_weight_tiling)


# --------------------------------------------------------------------------
# Reference + params (mirror nn.Linear init; weights stored as (in, out))
# --------------------------------------------------------------------------
def init_decoder_params(key, n_z, n_f, n_out, dtype=jnp.float32):
    k1, k2, k3, k4 = jax.random.split(key, 4)
    lim1 = 1.0 / jnp.sqrt(jnp.asarray(n_z, dtype))
    lim2 = 1.0 / jnp.sqrt(jnp.asarray(n_f, dtype))
    w1 = jax.random.uniform(k1, (n_z, n_f), dtype, -lim1, lim1)
    b1 = jax.random.uniform(k2, (1, n_f), dtype, -lim1, lim1)
    w2 = jax.random.uniform(k3, (n_f, n_out), dtype, -lim2, lim2)
    b2 = jax.random.uniform(k4, (1, n_out), dtype, -lim2, lim2)
    return w1, b1, w2, b2


def decoder_reference(z, w1, b1, w2, b2):
    h = jnp.maximum(z @ w1 + b1, 0.0)
    return h @ w2 + b2


if __name__ == "__main__":
    n_z, n_f, n_out = 16, 32, 24
    key = jax.random.PRNGKey(0)
    k_z1, k_z2, k_z3, k_p = jax.random.split(key, 4)
    w1, b1, w2, b2 = init_decoder_params(k_p, n_z, n_f, n_out)

    # Case 1: exact f32 MXU path, tiny batch (single grid step).
    z1 = jax.random.normal(k_z1, (8, n_z), jnp.float32)
    out1 = jax.block_until_ready(
        decoder_forward(z1, w1, b1, w2, b2, mxu_dtype=jnp.float32))
    ref1 = decoder_reference(z1, w1, b1, w2, b2)
    assert out1.shape == (8, n_out)
    assert jnp.allclose(out1, ref1, atol=1e-5, rtol=1e-5), "mismatch (f32 path)"

    # Case 2: default bf16 MXU operands (f32 accumulation), non-divisible batch
    # -> exercises auto tile sizing, multi-step parallel grid and tail padding.
    z2 = jax.random.normal(k_z2, (44, n_z), jnp.float32)
    out2 = jax.block_until_ready(decoder_forward(z2, w1, b1, w2, b2))
    ref2 = decoder_reference(z2, w1, b1, w2, b2)
    assert out2.shape == (44, n_out)
    assert jnp.allclose(out2, ref2, atol=1e-1, rtol=1e-1), "mismatch (bf16 path)"

    # Case 3: forced weight-tiled fallback (2-D grid, W2 streamed over n_out),
    # exact f32 so the path is verified tightly.
    n_out3 = 200
    w1c, b1c, w2c, b2c = init_decoder_params(jax.random.PRNGKey(1), n_z, n_f, n_out3)
    z3 = jax.random.normal(k_z3, (40, n_z), jnp.float32)
    out3 = jax.block_until_ready(
        decoder_forward(z3, w1c, b1c, w2c, b2c, mxu_dtype=jnp.float32,
                        force_weight_tiling=True, tb=16, tn=128))
    ref3 = decoder_reference(z3, w1c, b1c, w2c, b2c)
    assert out3.shape == (40, n_out3)
    assert jnp.allclose(out3, ref3, atol=1e-5, rtol=1e-5), "mismatch (tiled path)"

    print("KERNEL_OK")
</pallas_src>

<mosaic_0001>
module attributes {stable_mosaic.version = 11 : i64} {
  func.func @_decoder_kernel_resident(%arg0: i32, %arg1: memref<8x16xf32, #tpu.memory_space<vmem>>, %arg2: memref<16x128xf32, #tpu.memory_space<vmem>>, %arg3: memref<1x128xf32, #tpu.memory_space<vmem>>, %arg4: memref<128x128xf32, #tpu.memory_space<vmem>>, %arg5: memref<1x128xf32, #tpu.memory_space<vmem>>, %arg6: memref<8x128xf32, #tpu.memory_space<vmem>>) attributes {dimension_semantics = [#tpu.dimension_semantics<parallel>], iteration_bounds = array<i64: 1>, scalar_prefetch = 0 : i64, scratch_operands = 0 : i64, tpu.core_type = #tpu.core_type<tc>, window_params = [{transform_indices = @transform_0, window_bounds = array<i64: 8, 16>}, {pipeline_mode = #tpu.pipeline_mode<synchronous>, transform_indices = @transform_1, window_bounds = array<i64: 16, 128>}, {pipeline_mode = #tpu.pipeline_mode<synchronous>, transform_indices = @transform_2, window_bounds = array<i64: 1, 128>}, {pipeline_mode = #tpu.pipeline_mode<synchronous>, transform_indices = @transform_3, window_bounds = array<i64: 128, 128>}, {pipeline_mode = #tpu.pipeline_mode<synchronous>, transform_indices = @transform_4, window_bounds = array<i64: 1, 128>}, {transform_indices = @transform_5, window_bounds = array<i64: 8, 128>}]} {
    %c0 = arith.constant 0 : index
    %c0_0 = arith.constant 0 : index
    %0 = vector.load %arg1[%c0, %c0_0] : memref<8x16xf32, #tpu.memory_space<vmem>>, vector<8x16xf32>
    %c0_1 = arith.constant 0 : index
    %c0_2 = arith.constant 0 : index
    %1 = vector.load %arg2[%c0_1, %c0_2] : memref<16x128xf32, #tpu.memory_space<vmem>>, vector<16x128xf32>
    %cst = arith.constant dense<0.000000e+00> : vector<8x128xf32>
    %2 = tpu.matmul %0, %1, %cst {dimension_numbers = #tpu.dot_dimension_numbers<[1], [0], [0], [1], [0, 0, 1, 1], [], []>} : vector<8x16xf32>, vector<16x128xf32>, vector<8x128xf32> -> vector<8x128xf32>
    %c0_3 = arith.constant 0 : index
    %c0_4 = arith.constant 0 : index
    %3 = vector.load %arg3[%c0_3, %c0_4] : memref<1x128xf32, #tpu.memory_space<vmem>>, vector<1x128xf32>
    %4 = vector.broadcast %3 : vector<1x128xf32> to vector<8x128xf32>
    %5 = arith.addf %2, %4 : vector<8x128xf32>
    %cst_5 = arith.constant 0.000000e+00 : f32
    %6 = vector.broadcast %cst_5 : f32 to vector<8x128xf32>
    %7 = arith.maximumf %5, %6 : vector<8x128xf32>
    %c0_6 = arith.constant 0 : index
    %c0_7 = arith.constant 0 : index
    %8 = vector.load %arg4[%c0_6, %c0_7] : memref<128x128xf32, #tpu.memory_space<vmem>>, vector<128x128xf32>
    %cst_8 = arith.constant dense<0.000000e+00> : vector<8x128xf32>
    %9 = tpu.matmul %7, %8, %cst_8 {dimension_numbers = #tpu.dot_dimension_numbers<[1], [0], [0], [1], [0, 0, 1, 1], [], []>} : vector<8x128xf32>, vector<128x128xf32>, vector<8x128xf32> -> vector<8x128xf32>
    %c0_9 = arith.constant 0 : index
    %c0_10 = arith.constant 0 : index
    %10 = vector.load %arg5[%c0_9, %c0_10] : memref<1x128xf32, #tpu.memory_space<vmem>>, vector<1x128xf32>
    %11 = vector.broadcast %10 : vector<1x128xf32> to vector<8x128xf32>
    %12 = arith.addf %9, %11 : vector<8x128xf32>
    %c0_11 = arith.constant 0 : index
    %c0_12 = arith.constant 0 : index
    %13 = vector.load %arg6[%c0_11, %c0_12] : memref<8x128xf32, #tpu.memory_space<vmem>>, vector<8x128xf32>
    tpu.vector_store %arg6[%c0_11, %c0_12], %12 {strides = array<i32>} : memref<8x128xf32, #tpu.memory_space<vmem>>, vector<8x128xf32>,
    return
  }
  func.func @transform_0(%arg0: i32) -> (i32, i32) {
    %c0_i32 = arith.constant 0 : i32
    %c0_i32_0 = arith.constant 0 : i32
    return %arg0, %c0_i32 : i32, i32
  }
  func.func @transform_1(%arg0: i32) -> (i32, i32) {
    %c0_i32 = arith.constant 0 : i32
    %c0_i32_0 = arith.constant 0 : i32
    %c0_i32_1 = arith.constant 0 : i32
    return %c0_i32, %c0_i32_0 : i32, i32
  }
  func.func @transform_2(%arg0: i32) -> (i32, i32) {
    %c0_i32 = arith.constant 0 : i32
    %c0_i32_0 = arith.constant 0 : i32
    %c0_i32_1 = arith.constant 0 : i32
    return %c0_i32, %c0_i32_0 : i32, i32
  }
  func.func @transform_3(%arg0: i32) -> (i32, i32) {
    %c0_i32 = arith.constant 0 : i32
    %c0_i32_0 = arith.constant 0 : i32
    %c0_i32_1 = arith.constant 0 : i32
    return %c0_i32, %c0_i32_0 : i32, i32
  }
  func.func @transform_4(%arg0: i32) -> (i32, i32) {
    %c0_i32 = arith.constant 0 : i32
    %c0_i32_0 = arith.constant 0 : i32
    %c0_i32_1 = arith.constant 0 : i32
    return %c0_i32, %c0_i32_0 : i32, i32
  }
  func.func @transform_5(%arg0: i32) -> (i32, i32) {
    %c0_i32 = arith.constant 0 : i32
    %c0_i32_0 = arith.constant 0 : i32
    return %arg0, %c0_i32 : i32, i32
  }
}

</mosaic_0001>

<llo_original>
// kernel: tpu_custom_call.1
$region0: #{tpu_custom_call.1}
  #allocation0 [shape = 'u32[]', space=smem, size = 0x4, offset = 0x4, fixed_abs, tag = 'smem constant byte address 0x4 - core index']
  #allocation1 [shape = 'u32[144,128]{1,0:T(1,128)}', space=vmem, size = 0x12000, scoped, tag = 'internal scratch']
  %s0 = inlined_call_operand.hbm [shape: f32[8,16], index: 0, kind: input, shape index: {}]
  %s1 = inlined_call_operand.hbm [shape: f32[16,128], index: 1, kind: input, shape index: {}]
  %s2 = inlined_call_operand.vmem [shape: f32[1,128], index: 2, kind: input, shape index: {}]
  %s3 = inlined_call_operand.hbm [shape: f32[128,128], index: 3, kind: input, shape index: {}]
  %s4 = inlined_call_operand.vmem [shape: f32[1,128], index: 4, kind: input, shape index: {}]
  %s5 = inlined_call_operand.hbm [shape: f32[8,128], index: 5, kind: output, shape index: {}]
  %s6 = sld [smem:[#allocation0]]
  $region42: #{tpu_custom_call.1} parent=0
    _
  %s8 = ssub.s32 1, %s6
  %s9 = scalar_select 0, %s8, %s6
  $region1: #{tpu_custom_call.1} parent=0
    #allocation2 [shape = 'u8[4096]{0}', space=vmem, size = 0x1000, scoped, tag = 'input window, operand 0, single buffered']
    #allocation3 [shape = 's32[1]{0}', space=sflag, size = 0x4, scoped, tag = 'scoped memory for tpu_custom_call.1']
    #allocation4 [shape = 's32[1]{0}', space=sflag, size = 0x4, scoped, tag = 'scoped memory for tpu_custom_call.1']
    #allocation5 [shape = 'u8[8192]{0}', space=vmem, size = 0x2000, scoped, tag = 'input window, operand 1, single buffered']
    #allocation6 [shape = 's32[1]{0}', space=sflag, size = 0x4, scoped, tag = 'scoped memory for tpu_custom_call.1']
    #allocation7 [shape = 'u8[65536]{0}', space=vmem, size = 0x10000, scoped, tag = 'input window, operand 3, single buffered']
    #allocation8 [shape = 'u8[4096]{0}', space=vmem, size = 0x1000, scoped, tag = 'output window, operand 0, single buffered']
    %10 = vsyncpa [#allocation3], 0
    %11 = vsyncpa [#allocation6], 0
    %12 = vsyncpa [#allocation4], 0
    // Predicated region
    $region2: #{tpu_custom_call.1} parent=1 // pred_check
      _
    $region3: #{tpu_custom_call.1} parent=1 // pred_check_branch
      %14 = sbr.rel (0) target = $region5
    $region4: #{tpu_custom_call.1} parent=1 // pred_region
      %s16 = ssub.s32 128, 128
      %17 = vsyncadd [#allocation3], %s16
      %s19 = sshll.u32 [#allocation2], 4
      %s20 = int_to_ptr.vmem [resolvable:$true] %s19
      %22 = dma.hbm_to_vmem [thread:$0]  %s0, 128, %s20, [#allocation3]
    $region5: #{tpu_custom_call.1} parent=1 // pred_fallthru
      _
    // Predicated region
    $region6: #{tpu_custom_call.1} parent=1 // pred_check
      _
    $region7: #{tpu_custom_call.1} parent=1 // pred_check_branch
      %24 = sbr.rel (0) target = $region9
    $region8: #{tpu_custom_call.1} parent=1 // pred_region
      %s26 = ssub.s32 256, 256
      %27 = vsyncadd [#allocation6], %s26
      %s28 = sshll.u32 [#allocation5], 4
      %s29 = int_to_ptr.vmem [resolvable:$true] %s28
      %34 = dma.hbm_to_vmem [thread:$0]  %s1, 256, %s29, [#allocation6], 128, 128, 8
    $region9: #{tpu_custom_call.1} parent=1 // pred_fallthru
      _
    // Predicated region
    $region10: #{tpu_custom_call.1} parent=1 // pred_check
      _
    $region11: #{tpu_custom_call.1} parent=1 // pred_check_branch
      %36 = sbr.rel (0) target = $region13
    $region12: #{tpu_custom_call.1} parent=1 // pred_region
      _
    $region13: #{tpu_custom_call.1} parent=1 // pred_fallthru
      _
    // Predicated region
    $region14: #{tpu_custom_call.1} parent=1 // pred_check
      _
    $region15: #{tpu_custom_call.1} parent=1 // pred_check_branch
      %38 = sbr.rel (0) target = $region17
    $region16: #{tpu_custom_call.1} parent=1 // pred_region
      %s40 = ssub.s32 2048, 2048
      %41 = vsyncadd [#allocation6], %s40
      %s42 = sshll.u32 [#allocation7], 4
      %s43 = int_to_ptr.vmem [resolvable:$true] %s42
      %48 = dma.hbm_to_vmem [thread:$0]  %s3, 2048, %s43, [#allocation6], 128, 128, 8
    $region17: #{tpu_custom_call.1} parent=1 // pred_fallthru
      _
    // Predicated region
    $region18: #{tpu_custom_call.1} parent=1 // pred_check
      _
    $region19: #{tpu_custom_call.1} parent=1 // pred_check_branch
      %50 = sbr.rel (0) target = $region21
    $region20: #{tpu_custom_call.1} parent=1 // pred_region
      _
    $region21: #{tpu_custom_call.1} parent=1 // pred_fallthru
      _
    // Predicated region
    $region22: #{tpu_custom_call.1} parent=1 // pred_check
      _
    $region23: #{tpu_custom_call.1} parent=1 // pred_check_branch
      %52 = sbr.rel (0) target = $region25
    $region24: #{tpu_custom_call.1} parent=1 // pred_region
      %53 = dma.done [#allocation3], 128
    $region25: #{tpu_custom_call.1} parent=1 // pred_fallthru
      _
    // Predicated region
    $region26: #{tpu_custom_call.1} parent=1 // pred_check
      _
    $region27: #{tpu_custom_call.1} parent=1 // pred_check_branch
      %55 = sbr.rel (0) target = $region29
    $region28: #{tpu_custom_call.1} parent=1 // pred_region
      %56 = dma.done [#allocation6], 256
    $region29: #{tpu_custom_call.1} parent=1 // pred_fallthru
      _
    // Predicated region
    $region30: #{tpu_custom_call.1} parent=1 // pred_check
      _
    $region31: #{tpu_custom_call.1} parent=1 // pred_check_branch
      %58 = sbr.rel (0) target = $region33
    $region32: #{tpu_custom_call.1} parent=1 // pred_region
      %59 = dma.done [#allocation6], 2048
    $region33: #{tpu_custom_call.1} parent=1 // pred_fallthru
      _
    %v60 = vld [vmem:[#allocation2] sm:$0xff]
    %v61 = vld [vmem:[#allocation5] sm:$0xff]
    %v62 = vld [vmem:[#allocation5 + $0x8] sm:$0xff]
    %v63 = vld [vmem:[%s2] sm:$0x1]
    %v65 = vlaneseq
    %v66 = vshrl.u32 %v65, 7
    %v67 = vsub.s32 0, %v66
    %v68 = vrot.slane %v63, %v67
    %vm70 = vcmask 130048
    %v72 = vsel %vm70, %v60, 0
    %74 = vmatprep.subr.mxu0 0.0
    %75 = vmatpush1.msra.mxu0 %v61
    %76 = vmatprep.subr.mxu0 0.0
    %77 = vmatpush1.msra.mxu0 %v62
    %78 = vmatprep.subr.mxu0 0.0
    %79 = vmatpush1.msra.mxu0 0.0
    %80 = vmatprep.subr.mxu0 0.0
    %81 = vmatpush1.msra.mxu0 0.0
    %82 = vmatprep.subr.mxu0 0.0
    %83 = vmatpush1.msra.mxu0 0.0
    %84 = vmatprep.subr.mxu0 0.0
    %85 = vmatpush1.msra.mxu0 0.0
    %86 = vmatprep.subr.mxu0 0.0
    %87 = vmatpush1.msra.mxu0 0.0
    %88 = vmatprep.subr.mxu0 0.0
    %89 = vmatpush1.msra.mxu0 0.0
    %90 = vmatprep.subr.mxu0 0.0
    %91 = vmatpush1.msra.mxu0 0.0
    %92 = vmatprep.subr.mxu0 0.0
    %93 = vmatpush1.msra.mxu0 0.0
    %94 = vmatprep.subr.mxu0 0.0
    %95 = vmatpush1.msra.mxu0 0.0
    %96 = vmatprep.subr.mxu0 0.0
    %97 = vmatpush1.msra.mxu0 0.0
    %98 = vmatprep.subr.mxu0 0.0
    %99 = vmatpush1.msra.mxu0 0.0
    %100 = vmatprep.subr.mxu0 0.0
    %101 = vmatpush1.msra.mxu0 0.0
    %102 = vmatprep.subr.mxu0 0.0
    %103 = vmatpush1.msra.mxu0 0.0
    %104 = vmatprep.subr.mxu0 0.0
    %105 = vmatpush1.msra.mxu0 0.0
    %106 = vmatprep.subr.mxu0 0.0
    %107 = vmatpush1.msra.mxu0 0.0
    %108 = vmatprep.subr.mxu0 0.0
    %109 = vmatpush1.msra.mxu0 0.0
    %110 = vmatprep.subr.mxu0 0.0
    %111 = vmatpush1.msra.mxu0 0.0
    %112 = vmatprep.subr.mxu0 0.0
    %113 = vmatpush1.msra.mxu0 0.0
    %114 = vmatprep.subr.mxu0 0.0
    %115 = vmatpush1.msra.mxu0 0.0
    %116 = vmatprep.subr.mxu0 0.0
    %117 = vmatpush1.msra.mxu0 0.0
    %118 = vmatprep.subr.mxu0 0.0
    %119 = vmatpush1.msra.mxu0 0.0
    %120 = vmatprep.subr.mxu0 0.0
    %121 = vmatpush1.msra.mxu0 0.0
    %122 = vmatprep.subr.mxu0 0.0
    %123 = vmatpush1.msra.mxu0 0.0
    %124 = vmatprep.subr.mxu0 0.0
    %125 = vmatpush1.msra.mxu0 0.0
    %126 = vmatprep.subr.mxu0 0.0
    %127 = vmatpush1.msra.mxu0 0.0
    %128 = vmatprep.subr.mxu0 0.0
    %129 = vmatpush1.msra.mxu0 0.0
    %130 = vmatprep.subr.mxu0 0.0
    %131 = vmatpush1.msra.mxu0 0.0
    %132 = vmatprep.subr.mxu0 0.0
    %133 = vmatpush1.msra.mxu0 0.0
    %134 = vmatprep.subr.mxu0 0.0
    %135 = vmatpush1.msra.mxu0 0.0
    %136 = vmatprep.subr.mxu0 0.0
    %137 = vmatpush1.msra.mxu0 0.0
    %138 = vmatprep.mubr.f32.mxu0 0.0
    %139 = vmatmul.mubr.f32.gmra.mrb[0].mxu0 %v72
    %v140 = vpop.f32.mrb[0].mxu0
    %v141 = vadd.f32 %v68, %v140
    %v142 = vpop.f32.mrb[0].mxu0
    %143 = vdwg.mxu0
    %v144 = vmax.f32 %v141, 0.0
    %v145 = vld [vmem:[#allocation7] sm:$0xff]
    %v146 = vld [vmem:[#allocation7 + $0x8] sm:$0xff]
    %v147 = vld [vmem:[#allocation7 + $0x10] sm:$0xff]
    %v148 = vld [vmem:[#allocation7 + $0x18] sm:$0xff]
    %v149 = vld [vmem:[#allocation7 + $0x20] sm:$0xff]
    %v150 = vld [vmem:[#allocation7 + $0x28] sm:$0xff]
    %v151 = vld [vmem:[#allocation7 + $0x30] sm:$0xff]
    %v152 = vld [vmem:[#allocation7 + $0x38] sm:$0xff]
    %v153 = vld [vmem:[#allocation7 + $0x40] sm:$0xff]
    %v154 = vld [vmem:[#allocation7 + $0x48] sm:$0xff]
    %v155 = vld [vmem:[#allocation7 + $0x50] sm:$0xff]
    %v156 = vld [vmem:[#allocation7 + $0x58] sm:$0xff]
    %v157 = vld [vmem:[#allocation7 + $0x60] sm:$0xff]
    %v158 = vld [vmem:[#allocation7 + $0x68] sm:$0xff]
    %v159 = vld [vmem:[#allocation7 + $0x70] sm:$0xff]
    %v160 = vld [vmem:[#allocation7 + $0x78] sm:$0xff]
    %v161 = vld [vmem:[%s4] sm:$0x1]
    %v163 = vlaneseq
    %v164 = vshrl.u32 %v163, 7
    %v165 = vsub.s32 0, %v164
    %v166 = vrot.slane %v161, %v165
    %168 = vmatprep.subr.mxu0 0.0
    %169 = vmatpush1.msra.mxu0 %v145
    %170 = vmatprep.subr.mxu0 0.0
    %171 = vmatpush1.msra.mxu0 %v146
    %172 = vmatprep.subr.mxu0 0.0
    %173 = vmatpush1.msra.mxu0 %v147
    %174 = vmatprep.subr.mxu0 0.0
    %175 = vmatpush1.msra.mxu0 %v148
    %176 = vmatprep.subr.mxu0 0.0
    %177 = vmatpush1.msra.mxu0 %v149
    %178 = vmatprep.subr.mxu0 0.0
    %179 = vmatpush1.msra.mxu0 %v150
    %180 = vmatprep.subr.mxu0 0.0
    %181 = vmatpush1.msra.mxu0 %v151
    %182 = vmatprep.subr.mxu0 0.0
    %183 = vmatpush1.msra.mxu0 %v152
    %184 = vmatprep.subr.mxu0 0.0
    %185 = vmatpush1.msra.mxu0 %v153
    %186 = vmatprep.subr.mxu0 0.0
    %187 = vmatpush1.msra.mxu0 %v154
    %188 = vmatprep.subr.mxu0 0.0
    %189 = vmatpush1.msra.mxu0 %v155
    %190 = vmatprep.subr.mxu0 0.0
    %191 = vmatpush1.msra.mxu0 %v156
    %192 = vmatprep.subr.mxu0 0.0
    %193 = vmatpush1.msra.mxu0 %v157
    %194 = vmatprep.subr.mxu0 0.0
    %195 = vmatpush1.msra.mxu0 %v158
    %196 = vmatprep.subr.mxu0 0.0
    %197 = vmatpush1.msra.mxu0 %v159
    %198 = vmatprep.subr.mxu0 0.0
    %199 = vmatpush1.msra.mxu0 %v160
    %200 = vmatprep.subr.mxu0 0.0
    %201 = vmatpush1.msra.mxu0 0.0
    %202 = vmatprep.subr.mxu0 0.0
    %203 = vmatpush1.msra.mxu0 0.0
    %204 = vmatprep.subr.mxu0 0.0
    %205 = vmatpush1.msra.mxu0 0.0
    %206 = vmatprep.subr.mxu0 0.0
    %207 = vmatpush1.msra.mxu0 0.0
    %208 = vmatprep.subr.mxu0 0.0
    %209 = vmatpush1.msra.mxu0 0.0
    %210 = vmatprep.subr.mxu0 0.0
    %211 = vmatpush1.msra.mxu0 0.0
    %212 = vmatprep.subr.mxu0 0.0
    %213 = vmatpush1.msra.mxu0 0.0
    %214 = vmatprep.subr.mxu0 0.0
    %215 = vmatpush1.msra.mxu0 0.0
    %216 = vmatprep.subr.mxu0 0.0
    %217 = vmatpush1.msra.mxu0 0.0
    %218 = vmatprep.subr.mxu0 0.0
    %219 = vmatpush1.msra.mxu0 0.0
    %220 = vmatprep.subr.mxu0 0.0
    %221 = vmatpush1.msra.mxu0 0.0
    %222 = vmatprep.subr.mxu0 0.0
    %223 = vmatpush1.msra.mxu0 0.0
    %224 = vmatprep.subr.mxu0 0.0
    %225 = vmatpush1.msra.mxu0 0.0
    %226 = vmatprep.subr.mxu0 0.0
    %227 = vmatpush1.msra.mxu0 0.0
    %228 = vmatprep.subr.mxu0 0.0
    %229 = vmatpush1.msra.mxu0 0.0
    %230 = vmatprep.subr.mxu0 0.0
    %231 = vmatpush1.msra.mxu0 0.0
    %232 = vmatprep.mubr.f32.mxu0 0.0
    %233 = vmatmul.mubr.f32.gmra.mrb[0].mxu0 %v144
    %v234 = vpop.f32.mrb[0].mxu0
    %v235 = vadd.f32 %v166, %v234
    %v236 = vpop.f32.mrb[0].mxu0
    %237 = vdwg.mxu0
    %238 = vst [vmem:[#allocation8] sm:$0xff] %v235
    // Predicated region
    $region34: #{tpu_custom_call.1} parent=1 // pred_check
      _
    $region35: #{tpu_custom_call.1} parent=1 // pred_check_branch
      %240 = sbr.rel (0) target = $region37
    $region36: #{tpu_custom_call.1} parent=1 // pred_region
      %s242 = ssub.s32 128, 128
      %243 = vsyncadd [#allocation4], %s242
      %s245 = sshll.u32 [#allocation8], 4
      %s246 = int_to_ptr.vmem [resolvable:$true] %s245
      %248 = dma.vmem_to_hbm [thread:$0]  %s246, 128, %s5, [#allocation4]
    $region37: #{tpu_custom_call.1} parent=1 // pred_fallthru
      _
    // Predicated region
    $region38: #{tpu_custom_call.1} parent=1 // pred_check
      _
    $region39: #{tpu_custom_call.1} parent=1 // pred_check_branch
      %250 = sbr.rel (0) target = $region41
    $region40: #{tpu_custom_call.1} parent=1 // pred_region
      %251 = dma.done [#allocation4], 128
    $region41: #{tpu_custom_call.1} parent=1 // pred_fallthru
      _
    %252 = vsyncpa [#allocation3], 1
    %253 = vsyncpa [#allocation6], 1
    %254 = vsyncpa [#allocation4], 1

</llo_original>
